<compile_context>
chip_gen: v5e
topology: v5e:2x2
jax: 0.10.0
libtpu: 0.0.40
codegen_flags: <defaults>
</compile_context>

<pallas_src>
import jax
import jax.numpy as jnp
from jax.experimental import pallas as pl
from jax.experimental.pallas import tpu as pltpu


# ----- model sizes (small, consistent with MultVAE enc_dims = [items, 64, 16]) ---
NUM_ITEMS = 256   # self.num_items
H1 = 64           # enc_dims[1]
Z = 16            # enc_dims[-1]  (latent)
HP = 128          # hidden width padded to one full lane width
TB = 128          # batch tile (rows per grid step)


def multvae_kernel(uim_ref,
                   w0_ref, b0_ref,      # encoder L0 (padded):      (I, HP), (1, HP)
                   wf_ref, bf_ref,      # fused encL1+decL0 (pad.): (HP, HP), (1, HP)
                   w3_ref, b3_ref,      # decoder L1 (padded):      (HP, I), (1, I)
                   out_ref):
    x = uim_ref[...]                                           # (TB, I) f32

    # F.normalize along dim=1: x * rsqrt(max(sum(x^2), eps^2)) — EUP, no VPU divide
    sumsq = jnp.sum(x * x, axis=1, keepdims=True)
    h = x * jax.lax.rsqrt(jnp.maximum(sumsq, 1e-24))

    # dropout is identity in eval mode

    # encoder layer 0
    h = jnp.tanh(
        jnp.dot(h, w0_ref[...], preferred_element_type=jnp.float32) + b0_ref[...]
    )                                                          # (TB, HP)

    # encoder L1 + [:, :Z] slice + decoder L0 fused into one lane-dense matmul:
    #   tanh((h@W1+b1)[:, :Z] @ W2 + b2) == tanh(h @ (W1[:, :Z]@W2) + (b1[:, :Z]@W2+b2))
    h = jnp.tanh(
        jnp.dot(h, wf_ref[...], preferred_element_type=jnp.float32) + bf_ref[...]
    )                                                          # (TB, HP)

    # decoder layer 1
    o = jnp.dot(h, w3_ref[...], preferred_element_type=jnp.float32) + b3_ref[...]

    # novel=True: mask already-seen items to -inf
    out_ref[...] = jnp.where(x != 0.0, -jnp.inf, o)


def prepare_weights(params):
    """Fuse encoder-L1/decoder-L0 and zero-pad the hidden width to HP lanes."""
    (w0, b0, w1, b1, w2, b2, w3, b3) = params
    wf = w1[:, :Z] @ w2                                        # (H1, H1)
    bf = b1[:, :Z] @ w2 + b2                                   # (1,  H1)

    w0p = jnp.zeros((NUM_ITEMS, HP), jnp.float32).at[:, :H1].set(w0)
    b0p = jnp.zeros((1, HP), jnp.float32).at[:, :H1].set(b0)
    wfp = jnp.zeros((HP, HP), jnp.float32).at[:H1, :H1].set(wf)
    bfp = jnp.zeros((1, HP), jnp.float32).at[:, :H1].set(bf)
    w3p = jnp.zeros((HP, NUM_ITEMS), jnp.float32).at[:H1, :].set(w3)
    return (w0p, b0p, wfp, bfp, w3p, b3)


def multvae_forward(uim, params):
    w0p, b0p, wfp, bfp, w3p, b3 = prepare_weights(params)

    n_users = uim.shape[0]
    b_pad = pl.cdiv(n_users, TB) * TB
    uim_p = jnp.pad(uim, ((0, b_pad - n_users), (0, 0)))
    n_tiles = b_pad // TB

    # weights/biases: full-array blocks, constant block index => stay resident in
    # VMEM across grid steps (no re-DMA); only uim/out tiles are streamed.
    def resident(shape):
        return pl.BlockSpec(shape, lambda i: (0, 0))

    cost = pl.CostEstimate(
        flops=2 * b_pad * (NUM_ITEMS * HP + HP * HP + HP * NUM_ITEMS),
        transcendentals=b_pad * (2 * HP + 1),
        bytes_accessed=4 * (2 * b_pad * NUM_ITEMS
                            + NUM_ITEMS * HP + HP * HP + HP * NUM_ITEMS
                            + 2 * HP + NUM_ITEMS),
    )

    out_p = pl.pallas_call(
        multvae_kernel,
        out_shape=jax.ShapeDtypeStruct((b_pad, NUM_ITEMS), jnp.float32),
        grid_spec=pltpu.PrefetchScalarGridSpec(
            num_scalar_prefetch=0,
            grid=(n_tiles,),
            in_specs=[
                pl.BlockSpec((TB, NUM_ITEMS), lambda i: (i, 0)),   # streamed uim tile
                resident((NUM_ITEMS, HP)), resident((1, HP)),
                resident((HP, HP)),        resident((1, HP)),
                resident((HP, NUM_ITEMS)), resident((1, NUM_ITEMS)),
            ],
            out_specs=pl.BlockSpec((TB, NUM_ITEMS), lambda i: (i, 0)),
        ),
        compiler_params=pltpu.CompilerParams(
            dimension_semantics=("parallel",)),                    # 2 TCs on v7x
        cost_estimate=cost,
    )(uim_p, w0p, b0p, wfp, bfp, w3p, b3)

    return out_p[:n_users]


def init_params(key):
    """Deterministic init matching nn.Linear shapes (uniform +-1/sqrt(fan_in)).

    Weights are stored already transposed to (d_in, d_out)."""
    def linear(key, d_in, d_out):
        kw, kb = jax.random.split(key)
        bound = 1.0 / jnp.sqrt(jnp.float32(d_in))
        w = jax.random.uniform(kw, (d_in, d_out), jnp.float32, -bound, bound)
        b = jax.random.uniform(kb, (1, d_out), jnp.float32, -bound, bound)
        return w, b

    k0, k1, k2, k3 = jax.random.split(key, 4)
    w0, b0 = linear(k0, NUM_ITEMS, H1)      # encoder Linear(256, 64)
    w1, b1 = linear(k1, H1, 2 * Z)          # encoder Linear(64, 32)
    w2, b2 = linear(k2, Z, H1)              # decoder Linear(16, 64)
    w3, b3 = linear(k3, H1, NUM_ITEMS)      # decoder Linear(64, 256)
    return (w0, b0, w1, b1, w2, b2, w3, b3)


def reference_forward(uim, params):
    """Pure-JAX reference of the (unfused) eval-mode forward, for sanity checking."""
    (w0, b0, w1, b1, w2, b2, w3, b3) = params
    norm = jnp.sqrt(jnp.sum(uim * uim, axis=1, keepdims=True))
    h = uim / jnp.maximum(norm, 1e-12)
    h = jnp.tanh(h @ w0 + b0)
    h = h @ w1 + b1
    mu = h[:, :Z]
    o = jnp.tanh(mu @ w2 + b2)
    o = o @ w3 + b3
    return jnp.where(uim != 0.0, -jnp.inf, o)


if __name__ == "__main__":
    key = jax.random.PRNGKey(0)
    k_data, k_params = jax.random.split(key)

    B = 200  # users (padded inside the wrapper to 2 grid tiles of 128)
    # sparse-ish binary user-item interaction matrix
    uim = jax.random.bernoulli(k_data, p=0.05, shape=(B, NUM_ITEMS)).astype(jnp.float32)
    params = init_params(k_params)

    out = multvae_forward(uim, params)
    out = jax.block_until_ready(out)

    ref = reference_forward(uim, params)
    finite = jnp.isfinite(ref)
    assert out.shape == (B, NUM_ITEMS)
    assert bool(jnp.all(jnp.isfinite(out) == finite))
    # fusion / rsqrt change only float associativity; tolerance stays tight.
    assert bool(jnp.allclose(jnp.where(finite, out, 0.0),
                             jnp.where(finite, ref, 0.0),
                             atol=1e-4, rtol=1e-4))
    print("KERNEL_OK")
</pallas_src>

<mosaic_0001>
module attributes {stable_mosaic.version = 11 : i64} {
  func.func @multvae_kernel(%arg0: i32, %arg1: memref<128x256xf32, #tpu.memory_space<vmem>>, %arg2: memref<256x128xf32, #tpu.memory_space<vmem>>, %arg3: memref<1x128xf32, #tpu.memory_space<vmem>>, %arg4: memref<128x128xf32, #tpu.memory_space<vmem>>, %arg5: memref<1x128xf32, #tpu.memory_space<vmem>>, %arg6: memref<128x256xf32, #tpu.memory_space<vmem>>, %arg7: memref<1x256xf32, #tpu.memory_space<vmem>>, %arg8: memref<128x256xf32, #tpu.memory_space<vmem>>) attributes {dimension_semantics = [#tpu.dimension_semantics<parallel>], iteration_bounds = array<i64: 2>, scalar_prefetch = 0 : i64, scratch_operands = 0 : i64, tpu.core_type = #tpu.core_type<tc>, window_params = [{transform_indices = @transform_0, window_bounds = array<i64: 128, 256>}, {pipeline_mode = #tpu.pipeline_mode<synchronous>, transform_indices = @transform_1, window_bounds = array<i64: 256, 128>}, {pipeline_mode = #tpu.pipeline_mode<synchronous>, transform_indices = @transform_2, window_bounds = array<i64: 1, 128>}, {pipeline_mode = #tpu.pipeline_mode<synchronous>, transform_indices = @transform_3, window_bounds = array<i64: 128, 128>}, {pipeline_mode = #tpu.pipeline_mode<synchronous>, transform_indices = @transform_4, window_bounds = array<i64: 1, 128>}, {pipeline_mode = #tpu.pipeline_mode<synchronous>, transform_indices = @transform_5, window_bounds = array<i64: 128, 256>}, {pipeline_mode = #tpu.pipeline_mode<synchronous>, transform_indices = @transform_6, window_bounds = array<i64: 1, 256>}, {transform_indices = @transform_7, window_bounds = array<i64: 128, 256>}]} {
    %c0 = arith.constant 0 : index
    %c0_0 = arith.constant 0 : index
    %0 = vector.load %arg1[%c0, %c0_0] : memref<128x256xf32, #tpu.memory_space<vmem>>, vector<128x256xf32>
    %1 = arith.mulf %0, %0 : vector<128x256xf32>
    %cst = arith.constant dense<0.000000e+00> : vector<128xf32>
    %2 = vector.multi_reduction <add>, %1, %cst [1] : vector<128x256xf32> to vector<128xf32>
    %3 = vector.shape_cast %2 : vector<128xf32> to vector<128x1xf32>
    %cst_1 = arith.constant 1.000000e-24 : f32
    %4 = vector.broadcast %cst_1 : f32 to vector<128x1xf32>
    %5 = arith.maximumf %3, %4 : vector<128x1xf32>
    %6 = math.rsqrt %5 : vector<128x1xf32>
    %7 = vector.broadcast %6 : vector<128x1xf32> to vector<128x256xf32>
    %8 = arith.mulf %0, %7 : vector<128x256xf32>
    %c0_2 = arith.constant 0 : index
    %c0_3 = arith.constant 0 : index
    %9 = vector.load %arg2[%c0_2, %c0_3] : memref<256x128xf32, #tpu.memory_space<vmem>>, vector<256x128xf32>
    %cst_4 = arith.constant dense<0.000000e+00> : vector<128x128xf32>
    %10 = tpu.matmul %8, %9, %cst_4 {dimension_numbers = #tpu.dot_dimension_numbers<[1], [0], [0], [1], [0, 0, 1, 1], [], []>} : vector<128x256xf32>, vector<256x128xf32>, vector<128x128xf32> -> vector<128x128xf32>
    %c0_5 = arith.constant 0 : index
    %c0_6 = arith.constant 0 : index
    %11 = vector.load %arg3[%c0_5, %c0_6] : memref<1x128xf32, #tpu.memory_space<vmem>>, vector<1x128xf32>
    %12 = vector.broadcast %11 : vector<1x128xf32> to vector<128x128xf32>
    %13 = arith.addf %10, %12 : vector<128x128xf32>
    %14 = math.tanh %13 : vector<128x128xf32>
    %c0_7 = arith.constant 0 : index
    %c0_8 = arith.constant 0 : index
    %15 = vector.load %arg4[%c0_7, %c0_8] : memref<128x128xf32, #tpu.memory_space<vmem>>, vector<128x128xf32>
    %cst_9 = arith.constant dense<0.000000e+00> : vector<128x128xf32>
    %16 = tpu.matmul %14, %15, %cst_9 {dimension_numbers = #tpu.dot_dimension_numbers<[1], [0], [0], [1], [0, 0, 1, 1], [], []>} : vector<128x128xf32>, vector<128x128xf32>, vector<128x128xf32> -> vector<128x128xf32>
    %c0_10 = arith.constant 0 : index
    %c0_11 = arith.constant 0 : index
    %17 = vector.load %arg5[%c0_10, %c0_11] : memref<1x128xf32, #tpu.memory_space<vmem>>, vector<1x128xf32>
    %18 = vector.broadcast %17 : vector<1x128xf32> to vector<128x128xf32>
    %19 = arith.addf %16, %18 : vector<128x128xf32>
    %20 = math.tanh %19 : vector<128x128xf32>
    %c0_12 = arith.constant 0 : index
    %c0_13 = arith.constant 0 : index
    %21 = vector.load %arg6[%c0_12, %c0_13] : memref<128x256xf32, #tpu.memory_space<vmem>>, vector<128x256xf32>
    %cst_14 = arith.constant dense<0.000000e+00> : vector<128x256xf32>
    %22 = tpu.matmul %20, %21, %cst_14 {dimension_numbers = #tpu.dot_dimension_numbers<[1], [0], [0], [1], [0, 0, 1, 1], [], []>} : vector<128x128xf32>, vector<128x256xf32>, vector<128x256xf32> -> vector<128x256xf32>
    %c0_15 = arith.constant 0 : index
    %c0_16 = arith.constant 0 : index
    %23 = vector.load %arg7[%c0_15, %c0_16] : memref<1x256xf32, #tpu.memory_space<vmem>>, vector<1x256xf32>
    %24 = vector.broadcast %23 : vector<1x256xf32> to vector<128x256xf32>
    %25 = arith.addf %22, %24 : vector<128x256xf32>
    %cst_17 = arith.constant 0.000000e+00 : f32
    %26 = vector.broadcast %cst_17 : f32 to vector<128x256xf32>
    %27 = arith.cmpf one, %0, %26 : vector<128x256xf32>
    %cst_18 = arith.constant 0xFF800000 : f32
    %28 = vector.broadcast %cst_18 : f32 to vector<128x256xf32>
    %29 = arith.select %27, %28, %25 : vector<128x256xi1>, vector<128x256xf32>
    %c0_19 = arith.constant 0 : index
    %c0_20 = arith.constant 0 : index
    %30 = vector.load %arg8[%c0_19, %c0_20] : memref<128x256xf32, #tpu.memory_space<vmem>>, vector<128x256xf32>
    tpu.vector_store %arg8[%c0_19, %c0_20], %29 {strides = array<i32>} : memref<128x256xf32, #tpu.memory_space<vmem>>, vector<128x256xf32>,
    return
  }
  func.func @transform_0(%arg0: i32) -> (i32, i32) {
    %c0_i32 = arith.constant 0 : i32
    %c0_i32_0 = arith.constant 0 : i32
    return %arg0, %c0_i32 : i32, i32
  }
  func.func @transform_1(%arg0: i32) -> (i32, i32) {
    %c0_i32 = arith.constant 0 : i32
    %c0_i32_0 = arith.constant 0 : i32
    %c0_i32_1 = arith.constant 0 : i32
    return %c0_i32, %c0_i32_0 : i32, i32
  }
  func.func @transform_2(%arg0: i32) -> (i32, i32) {
    %c0_i32 = arith.constant 0 : i32
    %c0_i32_0 = arith.constant 0 : i32
    %c0_i32_1 = arith.constant 0 : i32
    return %c0_i32, %c0_i32_0 : i32, i32
  }
  func.func @transform_3(%arg0: i32) -> (i32, i32) {
    %c0_i32 = arith.constant 0 : i32
    %c0_i32_0 = arith.constant 0 : i32
    %c0_i32_1 = arith.constant 0 : i32
    return %c0_i32, %c0_i32_0 : i32, i32
  }
  func.func @transform_4(%arg0: i32) -> (i32, i32) {
    %c0_i32 = arith.constant 0 : i32
    %c0_i32_0 = arith.constant 0 : i32
    %c0_i32_1 = arith.constant 0 : i32
    return %c0_i32, %c0_i32_0 : i32, i32
  }
  func.func @transform_5(%arg0: i32) -> (i32, i32) {
    %c0_i32 = arith.constant 0 : i32
    %c0_i32_0 = arith.constant 0 : i32
    %c0_i32_1 = arith.constant 0 : i32
    return %c0_i32, %c0_i32_0 : i32, i32
  }
  func.func @transform_6(%arg0: i32) -> (i32, i32) {
    %c0_i32 = arith.constant 0 : i32
    %c0_i32_0 = arith.constant 0 : i32
    %c0_i32_1 = arith.constant 0 : i32
    return %c0_i32, %c0_i32_0 : i32, i32
  }
  func.func @transform_7(%arg0: i32) -> (i32, i32) {
    %c0_i32 = arith.constant 0 : i32
    %c0_i32_0 = arith.constant 0 : i32
    return %arg0, %c0_i32 : i32, i32
  }
}

</mosaic_0001>

<llo_original>
// kernel: tpu_custom_call.1
$region0: #{tpu_custom_call.1}
  #allocation0 [shape = 'u32[]', space=smem, size = 0x4, offset = 0x4, fixed_abs, tag = 'smem constant byte address 0x4 - core index']
  #allocation1 [shape = 'u32[72,128]{1,0:T(1,128)}', space=vmem, size = 0x9000, scoped, tag = 'internal scratch']
  %s0 = inlined_call_operand.hbm [shape: f32[256,256], index: 0, kind: input, shape index: {}]
  %s1 = inlined_call_operand.hbm [shape: f32[256,128], index: 1, kind: input, shape index: {}]
  %s2 = inlined_call_operand.vmem [shape: f32[1,128], index: 2, kind: input, shape index: {}]
  %s3 = inlined_call_operand.hbm [shape: f32[128,128], index: 3, kind: input, shape index: {}]
  %s4 = inlined_call_operand.hbm [shape: f32[1,128], index: 4, kind: input, shape index: {}]
  %s5 = inlined_call_operand.hbm [shape: f32[128,256], index: 5, kind: input, shape index: {}]
  %s6 = inlined_call_operand.vmem [shape: f32[1,256], index: 6, kind: input, shape index: {}]
  %s7 = inlined_call_operand.hbm [shape: f32[256,256], index: 7, kind: output, shape index: {}]
  %s8 = sld [smem:[#allocation0]]
  $region81: #{tpu_custom_call.1} parent=0
    _
  %s10 = ssub.s32 1, %s8
  %s11 = scalar_select 0, %s10, %s8
  $region1: #{tpu_custom_call.1} parent=0
    #allocation2 [shape = 'u8[262144]{0}', space=vmem, size = 0x40000, scoped, tag = 'input window, operand 0']
    #allocation3 [shape = 's32[2]{0}', space=sflag, size = 0x8, scoped, tag = 'scoped memory for tpu_custom_call.1']
    #allocation4 [shape = 's32[2]{0}', space=sflag, size = 0x8, scoped, tag = 'scoped memory for tpu_custom_call.1']
    #allocation5 [shape = 'u8[131072]{0}', space=vmem, size = 0x20000, scoped, tag = 'input window, operand 1, single buffered']
    #allocation6 [shape = 's32[1]{0}', space=sflag, size = 0x4, scoped, tag = 'scoped memory for tpu_custom_call.1']
    #allocation7 [shape = 'u8[65536]{0}', space=vmem, size = 0x10000, scoped, tag = 'input window, operand 3, single buffered']
    #allocation8 [shape = 'u8[512]{0}', space=vmem, size = 0x400, scoped, tag = 'input window, operand 4, single buffered']
    #allocation9 [shape = 's32[1]{0}', space=sflag, size = 0x4, scoped, tag = 'scoped memory for tpu_custom_call.1']
    #allocation10 [shape = 'u8[131072]{0}', space=vmem, size = 0x20000, scoped, tag = 'input window, operand 5, single buffered']
    #allocation11 [shape = 'u8[262144]{0}', space=vmem, size = 0x40000, scoped, tag = 'output window, operand 0']
    %12 = vsyncpa [#allocation3], 0
    %s13 = scalar_lea.sflag [#allocation3], 1
    %14 = vsyncpa %s13, 0
    %15 = vsyncpa [#allocation6], 0
    %16 = vsyncpa [#allocation9], 0
    %17 = vsyncpa [#allocation4], 0
    %s18 = scalar_lea.sflag [#allocation4], 1
    %19 = vsyncpa %s18, 0
    loop: start=0, step=1, limit=4
    $region2: #{tpu_custom_call.1} parent=1 // loop_pre_header
      _
    $region3: #{tpu_custom_call.1} parent=1 // loop_header
      %s21 = sphi 0, %s25
      %p22 = scmp.ge.s32.totalorder %s21, 4
      %s31 = sphi 0, %s33
      %s34 = sphi 0, %s31
      %s35 = sphi 0, %s34
      %s51 = sphi 0, %s35
      %s55 = sphi 0, %s55
      %s57 = sphi 0, %s55
      %s58 = sphi 0, %s57
      %s72 = sphi 0, %s58
      %s76 = sphi 0, %s76
      %s78 = sphi 0, %s76
      %s79 = sphi 0, %s78
      %s93 = sphi 0, %s79
      %s97 = sphi 0, %s97
      %s99 = sphi 0, %s97
      %s100 = sphi 0, %s99
      %s114 = sphi 0, %s100
      %s118 = sphi 0, %s118
      %s120 = sphi 0, %s118
      %s121 = sphi 0, %s120
      %s135 = sphi 0, %s121
      %s139 = sphi 0, %s139
      %s141 = sphi 0, %s139
      %s142 = sphi 0, %s141
      %s156 = sphi 0, %s142
      %s160 = sphi 0, %s160
      %s162 = sphi 0, %s160
      %s163 = sphi 0, %s162
      %s177 = sphi 0, %s163
      %s183 = sphi 0, %s185
      %s186 = sphi 0, %s183
      %s187 = sphi 0, %s186
      %s203 = sphi 0, %s187
    $region4: #{tpu_custom_call.1} parent=1 // loop_header_branch
      %24 = sbr.rel (%p22) target = $region8
    $region5: #{tpu_custom_call.1} parent=1 // loop_body
      %s26 = ssub.s32 %s21, 1
      %s27 = ssub.s32 %s21, 2
      %s28 = sadd.s32 %s21, 1
      %s29 = ssub.s32 %s21, %s28
      %p30 = scmp.eq.s32.totalorder %s29, 0
      %s32 = sadd.s32 %s31, 1
      %s33 = scalar_select %p30, %s31, %s32
      %p36 = pneg %p30
      %p37 = scmp.eq.s32.totalorder %s21, 1
      %p38 = por %p36, %p37
      %p39 = scmp.ne.s32.totalorder %s31, %s34
      %p40 = scmp.eq.s32.totalorder %s21, 0
      %p41 = por %p39, %p40
      %p42 = scmp.ne.s32.totalorder %s31, %s34
      %p43 = scmp.eq.s32.totalorder %s26, 1
      %p44 = por %p42, %p43
      %p45 = scmp.ne.s32.totalorder %s34, %s35
      %p46 = scmp.eq.s32.totalorder %s26, 0
      %p47 = por %p45, %p46
      %p48 = scmp.ne.s32.totalorder %s34, %s35
      %p49 = scmp.eq.s32.totalorder %s27, 1
      %p50 = por %p48, %p49
      %p52 = scmp.ne.s32.totalorder %s35, %s51
      %p53 = scmp.eq.s32.totalorder %s27, 0
      %p54 = por %p52, %p53
      %s56 = sadd.s32 %s55, 1
      %p59 = scmp.eq.s32.totalorder %s21, 1
      %p60 = scmp.ne.s32.totalorder %s55, %s57
      %p61 = scmp.eq.s32.totalorder %s21, 0
      %p62 = por %p60, %p61
      %p63 = scmp.ne.s32.totalorder %s55, %s57
      %p64 = scmp.eq.s32.totalorder %s26, 1
      %p65 = por %p63, %p64
      %p66 = scmp.ne.s32.totalorder %s57, %s58
      %p67 = scmp.eq.s32.totalorder %s26, 0
      %p68 = por %p66, %p67
      %p69 = scmp.ne.s32.totalorder %s57, %s58
      %p70 = scmp.eq.s32.totalorder %s27, 1
      %p71 = por %p69, %p70
      %p73 = scmp.ne.s32.totalorder %s58, %s72
      %p74 = scmp.eq.s32.totalorder %s27, 0
      %p75 = por %p73, %p74
      %s77 = sadd.s32 %s76, 1
      %p80 = scmp.eq.s32.totalorder %s21, 1
      %p81 = scmp.ne.s32.totalorder %s76, %s78
      %p82 = scmp.eq.s32.totalorder %s21, 0
      %p83 = por %p81, %p82
      %p84 = scmp.ne.s32.totalorder %s76, %s78
      %p85 = scmp.eq.s32.totalorder %s26, 1
      %p86 = por %p84, %p85
      %p87 = scmp.ne.s32.totalorder %s78, %s79
      %p88 = scmp.eq.s32.totalorder %s26, 0
      %p89 = por %p87, %p88
      %p90 = scmp.ne.s32.totalorder %s78, %s79
      %p91 = scmp.eq.s32.totalorder %s27, 1
      %p92 = por %p90, %p91
      %p94 = scmp.ne.s32.totalorder %s79, %s93
      %p95 = scmp.eq.s32.totalorder %s27, 0
      %p96 = por %p94, %p95
      %s98 = sadd.s32 %s97, 1
      %p101 = scmp.eq.s32.totalorder %s21, 1
      %p102 = scmp.ne.s32.totalorder %s97, %s99
      %p103 = scmp.eq.s32.totalorder %s21, 0
      %p104 = por %p102, %p103
      %p105 = scmp.ne.s32.totalorder %s97, %s99
      %p106 = scmp.eq.s32.totalorder %s26, 1
      %p107 = por %p105, %p106
      %p108 = scmp.ne.s32.totalorder %s99, %s100
      %p109 = scmp.eq.s32.totalorder %s26, 0
      %p110 = por %p108, %p109
      %p111 = scmp.ne.s32.totalorder %s99, %s100
      %p112 = scmp.eq.s32.totalorder %s27, 1
      %p113 = por %p111, %p112
      %p115 = scmp.ne.s32.totalorder %s100, %s114
      %p116 = scmp.eq.s32.totalorder %s27, 0
      %p117 = por %p115, %p116
      %s119 = sadd.s32 %s118, 1
      %p122 = scmp.eq.s32.totalorder %s21, 1
      %p123 = scmp.ne.s32.totalorder %s118, %s120
      %p124 = scmp.eq.s32.totalorder %s21, 0
      %p125 = por %p123, %p124
      %p126 = scmp.ne.s32.totalorder %s118, %s120
      %p127 = scmp.eq.s32.totalorder %s26, 1
      %p128 = por %p126, %p127
      %p129 = scmp.ne.s32.totalorder %s120, %s121
      %p130 = scmp.eq.s32.totalorder %s26, 0
      %p131 = por %p129, %p130
      %p132 = scmp.ne.s32.totalorder %s120, %s121
      %p133 = scmp.eq.s32.totalorder %s27, 1
      %p134 = por %p132, %p133
      %p136 = scmp.ne.s32.totalorder %s121, %s135
      %p137 = scmp.eq.s32.totalorder %s27, 0
      %p138 = por %p136, %p137
      %s140 = sadd.s32 %s139, 1
      %p143 = scmp.eq.s32.totalorder %s21, 1
      %p144 = scmp.ne.s32.totalorder %s139, %s141
      %p145 = scmp.eq.s32.totalorder %s21, 0
      %p146 = por %p144, %p145
      %p147 = scmp.ne.s32.totalorder %s139, %s141
      %p148 = scmp.eq.s32.totalorder %s26, 1
      %p149 = por %p147, %p148
      %p150 = scmp.ne.s32.totalorder %s141, %s142
      %p151 = scmp.eq.s32.totalorder %s26, 0
      %p152 = por %p150, %p151
      %p153 = scmp.ne.s32.totalorder %s141, %s142
      %p154 = scmp.eq.s32.totalorder %s27, 1
      %p155 = por %p153, %p154
      %p157 = scmp.ne.s32.totalorder %s142, %s156
      %p158 = scmp.eq.s32.totalorder %s27, 0
      %p159 = por %p157, %p158
      %s161 = sadd.s32 %s160, 1
      %p164 = scmp.eq.s32.totalorder %s21, 1
      %p165 = scmp.ne.s32.totalorder %s160, %s162
      %p166 = scmp.eq.s32.totalorder %s21, 0
      %p167 = por %p165, %p166
      %p168 = scmp.ne.s32.totalorder %s160, %s162
      %p169 = scmp.eq.s32.totalorder %s26, 1
      %p170 = por %p168, %p169
      %p171 = scmp.ne.s32.totalorder %s162, %s163
      %p172 = scmp.eq.s32.totalorder %s26, 0
      %p173 = por %p171, %p172
      %p174 = scmp.ne.s32.totalorder %s162, %s163
      %p175 = scmp.eq.s32.totalorder %s27, 1
      %p176 = por %p174, %p175
      %p178 = scmp.ne.s32.totalorder %s163, %s177
      %p179 = scmp.eq.s32.totalorder %s27, 0
      %p180 = por %p178, %p179
      %s181 = ssub.s32 %s21, %s28
      %p182 = scmp.eq.s32.totalorder %s181, 0
      %s184 = sadd.s32 %s183, 1
      %s185 = scalar_select %p182, %s183, %s184
      %p188 = pneg %p182
      %p189 = scmp.eq.s32.totalorder %s21, 1
      %p190 = por %p188, %p189
      %p191 = scmp.ne.s32.totalorder %s183, %s186
      %p192 = scmp.eq.s32.totalorder %s21, 0
      %p193 = por %p191, %p192
      %p194 = scmp.ne.s32.totalorder %s183, %s186
      %p195 = scmp.eq.s32.totalorder %s26, 1
      %p196 = por %p194, %p195
      %p197 = scmp.ne.s32.totalorder %s186, %s187
      %p198 = scmp.eq.s32.totalorder %s26, 0
      %p199 = por %p197, %p198
      %p200 = scmp.ne.s32.totalorder %s186, %s187
      %p201 = scmp.eq.s32.totalorder %s27, 1
      %p202 = por %p200, %p201
      %p204 = scmp.ne.s32.totalorder %s187, %s203
      %p205 = scmp.eq.s32.totalorder %s27, 0
      %p206 = por %p204, %p205
      %p207 = scmp.le.s32.totalorder 1, %s21
      %p208 = scmp.lt.s32.totalorder %s21, 3
      %p209 = pnand %p207, %p208
      %p210 = pneg %p209
      // Predicated region
      $region9: #{tpu_custom_call.1} parent=5 // pred_check
        _
      $region10: #{tpu_custom_call.1} parent=5 // pred_check_branch
        %212 = sbr.rel (%p209) target = $region12
      $region11: #{tpu_custom_call.1} parent=5 // pred_region
        %s213 = ssub.s32 %s21, 1
        // Predicated region
        $region13: #{tpu_custom_call.1} parent=11 // pred_check
          %p214 = pneg %p68
        $region14: #{tpu_custom_call.1} parent=11 // pred_check_branch
          %216 = sbr.rel (%p214) target = $region16
        $region15: #{tpu_custom_call.1} parent=11 // pred_region
          %218 = vsyncadd [#allocation6], 0
          %s219 = sshll.u32 %s1, 4
          %s220 = int_to_ptr.hbm [resolvable:$true] %s219
          %s221 = sshll.u32 [#allocation5], 4
          %s222 = int_to_ptr.vmem [resolvable:$true] %s221
          %227 = dma.hbm_to_vmem [thread:$0]  %s220, 4096, %s222, [#allocation6], 128, 128, 8
        $region16: #{tpu_custom_call.1} parent=11 // pred_fallthru
          _
        // Predicated region
        $region17: #{tpu_custom_call.1} parent=11 // pred_check
          %p228 = pneg %p89
        $region18: #{tpu_custom_call.1} parent=11 // pred_check_branch
          %230 = sbr.rel (%p228) target = $region20
        $region19: #{tpu_custom_call.1} parent=11 // pred_region
          _
        $region20: #{tpu_custom_call.1} parent=11 // pred_fallthru
          _
        // Predicated region
        $region21: #{tpu_custom_call.1} parent=11 // pred_check
          %p231 = pneg %p110
        $region22: #{tpu_custom_call.1} parent=11 // pred_check_branch
          %233 = sbr.rel (%p231) target = $region24
        $region23: #{tpu_custom_call.1} parent=11 // pred_region
          %235 = vsyncadd [#allocation6], 0
          %s236 = sshll.u32 %s3, 4
          %s237 = int_to_ptr.hbm [resolvable:$true] %s236
          %s238 = sshll.u32 [#allocation7], 4
          %s239 = int_to_ptr.vmem [resolvable:$true] %s238
          %244 = dma.hbm_to_vmem [thread:$0]  %s237, 2048, %s239, [#allocation6], 128, 128, 8
        $region24: #{tpu_custom_call.1} parent=11 // pred_fallthru
          _
        // Predicated region
        $region25: #{tpu_custom_call.1} parent=11 // pred_check
          %p245 = pneg %p131
        $region26: #{tpu_custom_call.1} parent=11 // pred_check_branch
          %247 = sbr.rel (%p245) target = $region28
        $region27: #{tpu_custom_call.1} parent=11 // pred_region
          %249 = vsyncadd [#allocation9], 0
          %s251 = sshll.u32 %s4, 4
          %s252 = int_to_ptr.hbm [resolvable:$true] %s251
          %s253 = sshll.u32 [#allocation8], 4
          %s254 = int_to_ptr.vmem [resolvable:$true] %s253
          %256 = dma.hbm_to_vmem [thread:$0]  %s252, 16, %s254, [#allocation9]
        $region28: #{tpu_custom_call.1} parent=11 // pred_fallthru
          _
        // Predicated region
        $region29: #{tpu_custom_call.1} parent=11 // pred_check
          %p257 = pneg %p152
        $region30: #{tpu_custom_call.1} parent=11 // pred_check_branch
          %259 = sbr.rel (%p257) target = $region32
        $region31: #{tpu_custom_call.1} parent=11 // pred_region
          %261 = vsyncadd [#allocation9], 0
          %s262 = sshll.u32 %s5, 4
          %s263 = int_to_ptr.hbm [resolvable:$true] %s262
          %s264 = sshll.u32 [#allocation10], 4
          %s265 = int_to_ptr.vmem [resolvable:$true] %s264
          %270 = dma.hbm_to_vmem [thread:$0]  %s263, 4096, %s265, [#allocation9], 256, 256, 16
        $region32: #{tpu_custom_call.1} parent=11 // pred_fallthru
          _
        // Predicated region
        $region33: #{tpu_custom_call.1} parent=11 // pred_check
          %p271 = pneg %p173
        $region34: #{tpu_custom_call.1} parent=11 // pred_check_branch
          %273 = sbr.rel (%p271) target = $region36
        $region35: #{tpu_custom_call.1} parent=11 // pred_region
          _
        $region36: #{tpu_custom_call.1} parent=11 // pred_fallthru
          _
      $region12: #{tpu_custom_call.1} parent=5 // pred_fallthru
        _
      %p274 = scmp.lt.s32.totalorder %s21, 2
      // Predicated region
      $region37: #{tpu_custom_call.1} parent=5 // pred_check
        %p275 = pneg %p274
      $region38: #{tpu_custom_call.1} parent=5 // pred_check_branch
        %277 = sbr.rel (%p275) target = $region40
      $region39: #{tpu_custom_call.1} parent=5 // pred_region
        // Predicated region
        $region41: #{tpu_custom_call.1} parent=39 // pred_check
          %p278 = pneg %p41
        $region42: #{tpu_custom_call.1} parent=39 // pred_check_branch
          %280 = sbr.rel (%p278) target = $region44
        $region43: #{tpu_custom_call.1} parent=39 // pred_region
          %s281 = sand.u32 %s31, 1
          %s282 = scalar_lea.sflag [#allocation3], %s281
          %s283 = sand.u32 %s31, 1
          %s284 = smul.addr %s283, 256
          %s285 = scalar_lea.vmem [#allocation2], %s284
          %s286 = smul.u32 16, %s21
          %288 = vsyncadd %s282, 0
          %s289 = smul.addr %s286, 2
          %s290 = smul.addr %s289, 8
          %s291 = scalar_lea.hbm %s0, %s290
          %s292 = sshll.u32 %s291, 4
          %s293 = int_to_ptr.hbm [resolvable:$true] %s292
          %s294 = sshll.u32 %s285, 4
          %s295 = int_to_ptr.vmem [resolvable:$true] %s294
          %300 = dma.hbm_to_vmem [thread:$0]  %s293, 4096, %s295, %s282, 256, 256, 16
        $region44: #{tpu_custom_call.1} parent=39 // pred_fallthru
          _
      $region40: #{tpu_custom_call.1} parent=5 // pred_fallthru
        _
      %p301 = scmp.le.s32.totalorder 1, %s21
      %p302 = scmp.lt.s32.totalorder %s21, 3
      %p303 = pnand %p301, %p302
      %p304 = pneg %p303
      // Predicated region
      $region45: #{tpu_custom_call.1} parent=5 // pred_check
        _
      $region46: #{tpu_custom_call.1} parent=5 // pred_check_branch
        %306 = sbr.rel (%p303) target = $region48
      $region47: #{tpu_custom_call.1} parent=5 // pred_region
        %s307 = ssub.s32 %s21, 1
        %s308 = sand.u32 %s34, 1
        %s309 = scalar_lea.sflag [#allocation3], %s308
        %s310 = sand.u32 %s34, 1
        %s311 = smul.addr %s310, 256
        %s312 = scalar_lea.vmem [#allocation2], %s311
        // Predicated region
        $region49: #{tpu_custom_call.1} parent=47 // pred_check
          %p313 = pneg %p47
        $region50: #{tpu_custom_call.1} parent=47 // pred_check_branch
          %315 = sbr.rel (%p313) target = $region52
        $region51: #{tpu_custom_call.1} parent=47 // pred_region
          %317 = dma.done %s309, 4096
        $region52: #{tpu_custom_call.1} parent=47 // pred_fallthru
          _
        // Predicated region
        $region53: #{tpu_custom_call.1} parent=47 // pred_check
          %p318 = pneg %p68
        $region54: #{tpu_custom_call.1} parent=47 // pred_check_branch
          %320 = sbr.rel (%p318) target = $region56
        $region55: #{tpu_custom_call.1} parent=47 // pred_region
          %322 = dma.done [#allocation6], 4096
        $region56: #{tpu_custom_call.1} parent=47 // pred_fallthru
          _
        // Predicated region
        $region57: #{tpu_custom_call.1} parent=47 // pred_check
          %p323 = pneg %p110
        $region58: #{tpu_custom_call.1} parent=47 // pred_check_branch
          %325 = sbr.rel (%p323) target = $region60
        $region59: #{tpu_custom_call.1} parent=47 // pred_region
          %327 = dma.done [#allocation6], 2048
        $region60: #{tpu_custom_call.1} parent=47 // pred_fallthru
          _
        // Predicated region
        $region61: #{tpu_custom_call.1} parent=47 // pred_check
          %p328 = pneg %p131
        $region62: #{tpu_custom_call.1} parent=47 // pred_check_branch
          %330 = sbr.rel (%p328) target = $region64
        $region63: #{tpu_custom_call.1} parent=47 // pred_region
          %332 = dma.done [#allocation9], 16
        $region64: #{tpu_custom_call.1} parent=47 // pred_fallthru
          _
        // Predicated region
        $region65: #{tpu_custom_call.1} parent=47 // pred_check
          %p333 = pneg %p152
        $region66: #{tpu_custom_call.1} parent=47 // pred_check_branch
          %335 = sbr.rel (%p333) target = $region68
        $region67: #{tpu_custom_call.1} parent=47 // pred_region
          %337 = dma.done [#allocation9], 4096
        $region68: #{tpu_custom_call.1} parent=47 // pred_fallthru
          _
        %s338 = sand.u32 %s34, 1
        %s339 = scalar_lea.sflag [#allocation3], %s338
        %s340 = sand.u32 %s34, 1
        %s341 = smul.addr %s340, 256
        %s342 = scalar_lea.vmem [#allocation2], %s341
        %p343 = pneg %p47
        %p344 = pneg %p44
        %p345 = pneg %p68
        %p346 = pneg %p65
        %p347 = pneg %p89
        %p348 = pneg %p86
        %p349 = pneg %p110
        %p350 = pneg %p107
        %p351 = pneg %p131
        %p352 = pneg %p128
        %p353 = pneg %p152
        %p354 = pneg %p149
        %p355 = pneg %p173
        %p356 = pneg %p170
        %p357 = pneg %p199
        %p358 = pneg %p196
        %s359 = sand.u32 %s186, 1
        %s360 = scalar_lea.sflag [#allocation4], %s359
        %s361 = sand.u32 %s186, 1
        %s362 = smul.addr %s361, 256
        %s363 = scalar_lea.vmem [#allocation11], %s362
        %s364 = smul.u32 16, %s26
        %s365 = smul.u32 16, %s26
        %v366 = vld [vmem:[%s312] sm:$0xff]
        %v367 = vld [vmem:[%s312 + $0x8] sm:$0xff]
        %v368 = vld [vmem:[%s312 + $0x10] sm:$0xff]
        %v369 = vld [vmem:[%s312 + $0x18] sm:$0xff]
        %v370 = vld [vmem:[%s312 + $0x20] sm:$0xff]
        %v371 = vld [vmem:[%s312 + $0x28] sm:$0xff]
        %v372 = vld [vmem:[%s312 + $0x30] sm:$0xff]
        %v373 = vld [vmem:[%s312 + $0x38] sm:$0xff]
        %v374 = vld [vmem:[%s312 + $0x40] sm:$0xff]
        %v375 = vld [vmem:[%s312 + $0x48] sm:$0xff]
        %v376 = vld [vmem:[%s312 + $0x50] sm:$0xff]
        %v377 = vld [vmem:[%s312 + $0x58] sm:$0xff]
        %v378 = vld [vmem:[%s312 + $0x60] sm:$0xff]
        %v379 = vld [vmem:[%s312 + $0x68] sm:$0xff]
        %v380 = vld [vmem:[%s312 + $0x70] sm:$0xff]
        %v381 = vld [vmem:[%s312 + $0x78] sm:$0xff]
        %v382 = vld [vmem:[%s312 + $0x80] sm:$0xff]
        %v383 = vld [vmem:[%s312 + $0x88] sm:$0xff]
        %v384 = vld [vmem:[%s312 + $0x90] sm:$0xff]
        %v385 = vld [vmem:[%s312 + $0x98] sm:$0xff]
        %v386 = vld [vmem:[%s312 + $0xa0] sm:$0xff]
        %v387 = vld [vmem:[%s312 + $0xa8] sm:$0xff]
        %v388 = vld [vmem:[%s312 + $0xb0] sm:$0xff]
        %v389 = vld [vmem:[%s312 + $0xb8] sm:$0xff]
        %v390 = vld [vmem:[%s312 + $0xc0] sm:$0xff]
        %v391 = vld [vmem:[%s312 + $0xc8] sm:$0xff]
        %v392 = vld [vmem:[%s312 + $0xd0] sm:$0xff]
        %v393 = vld [vmem:[%s312 + $0xd8] sm:$0xff]
        %v394 = vld [vmem:[%s312 + $0xe0] sm:$0xff]
        %v395 = vld [vmem:[%s312 + $0xe8] sm:$0xff]
        %v396 = vld [vmem:[%s312 + $0xf0] sm:$0xff]
        %v397 = vld [vmem:[%s312 + $0xf8] sm:$0xff]
        %v398 = vmul.f32 %v366, %v366
        %v399 = vmul.f32 %v367, %v367
        %v400 = vmul.f32 %v368, %v368
        %v401 = vmul.f32 %v369, %v369
        %v402 = vmul.f32 %v370, %v370
        %v403 = vmul.f32 %v371, %v371
        %v404 = vmul.f32 %v372, %v372
        %v405 = vmul.f32 %v373, %v373
        %v406 = vmul.f32 %v374, %v374
        %v407 = vmul.f32 %v375, %v375
        %v408 = vmul.f32 %v376, %v376
        %v409 = vmul.f32 %v377, %v377
        %v410 = vmul.f32 %v378, %v378
        %v411 = vmul.f32 %v379, %v379
        %v412 = vmul.f32 %v380, %v380
        %v413 = vmul.f32 %v381, %v381
        %v414 = vmul.f32 %v382, %v382
        %v415 = vmul.f32 %v383, %v383
        %v416 = vmul.f32 %v384, %v384
        %v417 = vmul.f32 %v385, %v385
        %v418 = vmul.f32 %v386, %v386
        %v419 = vmul.f32 %v387, %v387
        %v420 = vmul.f32 %v388, %v388
        %v421 = vmul.f32 %v389, %v389
        %v422 = vmul.f32 %v390, %v390
        %v423 = vmul.f32 %v391, %v391
        %v424 = vmul.f32 %v392, %v392
        %v425 = vmul.f32 %v393, %v393
        %v426 = vmul.f32 %v394, %v394
        %v427 = vmul.f32 %v395, %v395
        %v428 = vmul.f32 %v396, %v396
        %v429 = vmul.f32 %v397, %v397
        %v430 = vadd.f32 %v398, %v399
        %431 = vadd.xlane.f32.xlu0 %v430
        %v432 = vpop.xlane.xlu0 %431
        %v433 = vadd.f32 %v400, %v401
        %434 = vadd.xlane.f32.xlu0 %v433
        %v435 = vpop.xlane.xlu0 %434
        %v436 = vadd.f32 %v402, %v403
        %437 = vadd.xlane.f32.xlu0 %v436
        %v438 = vpop.xlane.xlu0 %437
        %v439 = vadd.f32 %v404, %v405
        %440 = vadd.xlane.f32.xlu0 %v439
        %v441 = vpop.xlane.xlu0 %440
        %v442 = vadd.f32 %v406, %v407
        %443 = vadd.xlane.f32.xlu0 %v442
        %v444 = vpop.xlane.xlu0 %443
        %v445 = vadd.f32 %v408, %v409
        %446 = vadd.xlane.f32.xlu0 %v445
        %v447 = vpop.xlane.xlu0 %446
        %v448 = vadd.f32 %v410, %v411
        %449 = vadd.xlane.f32.xlu0 %v448
        %v450 = vpop.xlane.xlu0 %449
        %v451 = vadd.f32 %v412, %v413
        %452 = vadd.xlane.f32.xlu0 %v451
        %v453 = vpop.xlane.xlu0 %452
        %v454 = vadd.f32 %v414, %v415
        %455 = vadd.xlane.f32.xlu0 %v454
        %v456 = vpop.xlane.xlu0 %455
        %v457 = vadd.f32 %v416, %v417
        %458 = vadd.xlane.f32.xlu0 %v457
        %v459 = vpop.xlane.xlu0 %458
        %v460 = vadd.f32 %v418, %v419
        %461 = vadd.xlane.f32.xlu0 %v460
        %v462 = vpop.xlane.xlu0 %461
        %v463 = vadd.f32 %v420, %v421
        %464 = vadd.xlane.f32.xlu0 %v463
        %v465 = vpop.xlane.xlu0 %464
        %v466 = vadd.f32 %v422, %v423
        %467 = vadd.xlane.f32.xlu0 %v466
        %v468 = vpop.xlane.xlu0 %467
        %v469 = vadd.f32 %v424, %v425
        %470 = vadd.xlane.f32.xlu0 %v469
        %v471 = vpop.xlane.xlu0 %470
        %v472 = vadd.f32 %v426, %v427
        %473 = vadd.xlane.f32.xlu0 %v472
        %v474 = vpop.xlane.xlu0 %473
        %v475 = vadd.f32 %v428, %v429
        %476 = vadd.xlane.f32.xlu0 %v475
        %v477 = vpop.xlane.xlu0 %476
        %v478 = vmax.f32 %v432, 1e-24
        %v479 = vmax.f32 %v435, 1e-24
        %v480 = vmax.f32 %v438, 1e-24
        %v481 = vmax.f32 %v441, 1e-24
        %v482 = vmax.f32 %v444, 1e-24
        %v483 = vmax.f32 %v447, 1e-24
        %v484 = vmax.f32 %v450, 1e-24
        %v485 = vmax.f32 %v453, 1e-24
        %v486 = vmax.f32 %v456, 1e-24
        %v487 = vmax.f32 %v459, 1e-24
        %v488 = vmax.f32 %v462, 1e-24
        %v489 = vmax.f32 %v465, 1e-24
        %v490 = vmax.f32 %v468, 1e-24
        %v491 = vmax.f32 %v471, 1e-24
        %v492 = vmax.f32 %v474, 1e-24
        %v493 = vmax.f32 %v477, 1e-24
        %v494 = vrsqrt.pop %v478
        %v495 = vmul.f32 %v494, %v478
        %v496 = vmul.f32 %v495, %v494
        %v497 = vmul.f32 0.5, %v496
        %v498 = vsub.f32 1.5, %v497
        %v499 = vmul.f32 %v494, %v498
        %vm500 = vweird.f32 %v478
        %vm501 = vweird.f32 %v494
        %vm502 = vmor %vm500, %vm501
        %v503 = vsel %vm502, %v494, %v499
        %v504 = vrsqrt.pop %v479
        %v505 = vmul.f32 %v504, %v479
        %v506 = vmul.f32 %v505, %v504
        %v507 = vmul.f32 0.5, %v506
        %v508 = vsub.f32 1.5, %v507
        %v509 = vmul.f32 %v504, %v508
        %vm510 = vweird.f32 %v479
        %vm511 = vweird.f32 %v504
        %vm512 = vmor %vm510, %vm511
        %v513 = vsel %vm512, %v504, %v509
        %v514 = vrsqrt.pop %v480
        %v515 = vmul.f32 %v514, %v480
        %v516 = vmul.f32 %v515, %v514
        %v517 = vmul.f32 0.5, %v516
        %v518 = vsub.f32 1.5, %v517
        %v519 = vmul.f32 %v514, %v518
        %vm520 = vweird.f32 %v480
        %vm521 = vweird.f32 %v514
        %vm522 = vmor %vm520, %vm521
        %v523 = vsel %vm522, %v514, %v519
        %v524 = vrsqrt.pop %v481
        %v525 = vmul.f32 %v524, %v481
        %v526 = vmul.f32 %v525, %v524
        %v527 = vmul.f32 0.5, %v526
        %v528 = vsub.f32 1.5, %v527
        %v529 = vmul.f32 %v524, %v528
        %vm530 = vweird.f32 %v481
        %vm531 = vweird.f32 %v524
        %vm532 = vmor %vm530, %vm531
        %v533 = vsel %vm532, %v524, %v529
        %v534 = vrsqrt.pop %v482
        %v535 = vmul.f32 %v534, %v482
        %v536 = vmul.f32 %v535, %v534
        %v537 = vmul.f32 0.5, %v536
        %v538 = vsub.f32 1.5, %v537
        %v539 = vmul.f32 %v534, %v538
        %vm540 = vweird.f32 %v482
        %vm541 = vweird.f32 %v534
        %vm542 = vmor %vm540, %vm541
        %v543 = vsel %vm542, %v534, %v539
        %v544 = vrsqrt.pop %v483
        %v545 = vmul.f32 %v544, %v483
        %v546 = vmul.f32 %v545, %v544
        %v547 = vmul.f32 0.5, %v546
        %v548 = vsub.f32 1.5, %v547
        %v549 = vmul.f32 %v544, %v548
        %vm550 = vweird.f32 %v483
        %vm551 = vweird.f32 %v544
        %vm552 = vmor %vm550, %vm551
        %v553 = vsel %vm552, %v544, %v549
        %v554 = vrsqrt.pop %v484
        %v555 = vmul.f32 %v554, %v484
        %v556 = vmul.f32 %v555, %v554
        %v557 = vmul.f32 0.5, %v556
        %v558 = vsub.f32 1.5, %v557
        %v559 = vmul.f32 %v554, %v558
        %vm560 = vweird.f32 %v484
        %vm561 = vweird.f32 %v554
        %vm562 = vmor %vm560, %vm561
        %v563 = vsel %vm562, %v554, %v559
        %v564 = vrsqrt.pop %v485
        %v565 = vmul.f32 %v564, %v485
        %v566 = vmul.f32 %v565, %v564
        %v567 = vmul.f32 0.5, %v566
        %v568 = vsub.f32 1.5, %v567
        %v569 = vmul.f32 %v564, %v568
        %vm570 = vweird.f32 %v485
        %vm571 = vweird.f32 %v564
        %vm572 = vmor %vm570, %vm571
        %v573 = vsel %vm572, %v564, %v569
        %v574 = vrsqrt.pop %v486
        %v575 = vmul.f32 %v574, %v486
        %v576 = vmul.f32 %v575, %v574
        %v577 = vmul.f32 0.5, %v576
        %v578 = vsub.f32 1.5, %v577
        %v579 = vmul.f32 %v574, %v578
        %vm580 = vweird.f32 %v486
        %vm581 = vweird.f32 %v574
        %vm582 = vmor %vm580, %vm581
        %v583 = vsel %vm582, %v574, %v579
        %v584 = vrsqrt.pop %v487
        %v585 = vmul.f32 %v584, %v487
        %v586 = vmul.f32 %v585, %v584
        %v587 = vmul.f32 0.5, %v586
        %v588 = vsub.f32 1.5, %v587
        %v589 = vmul.f32 %v584, %v588
        %vm590 = vweird.f32 %v487
        %vm591 = vweird.f32 %v584
        %vm592 = vmor %vm590, %vm591
        %v593 = vsel %vm592, %v584, %v589
        %v594 = vrsqrt.pop %v488
        %v595 = vmul.f32 %v594, %v488
        %v596 = vmul.f32 %v595, %v594
        %v597 = vmul.f32 0.5, %v596
        %v598 = vsub.f32 1.5, %v597
        %v599 = vmul.f32 %v594, %v598
        %vm600 = vweird.f32 %v488
        %vm601 = vweird.f32 %v594
        %vm602 = vmor %vm600, %vm601
        %v603 = vsel %vm602, %v594, %v599
        %v604 = vrsqrt.pop %v489
        %v605 = vmul.f32 %v604, %v489
        %v606 = vmul.f32 %v605, %v604
        %v607 = vmul.f32 0.5, %v606
        %v608 = vsub.f32 1.5, %v607
        %v609 = vmul.f32 %v604, %v608
        %vm610 = vweird.f32 %v489
        %vm611 = vweird.f32 %v604
        %vm612 = vmor %vm610, %vm611
        %v613 = vsel %vm612, %v604, %v609
        %v614 = vrsqrt.pop %v490
        %v615 = vmul.f32 %v614, %v490
        %v616 = vmul.f32 %v615, %v614
        %v617 = vmul.f32 0.5, %v616
        %v618 = vsub.f32 1.5, %v617
        %v619 = vmul.f32 %v614, %v618
        %vm620 = vweird.f32 %v490
        %vm621 = vweird.f32 %v614
        %vm622 = vmor %vm620, %vm621
        %v623 = vsel %vm622, %v614, %v619
        %v624 = vrsqrt.pop %v491
        %v625 = vmul.f32 %v624, %v491
        %v626 = vmul.f32 %v625, %v624
        %v627 = vmul.f32 0.5, %v626
        %v628 = vsub.f32 1.5, %v627
        %v629 = vmul.f32 %v624, %v628
        %vm630 = vweird.f32 %v491
        %vm631 = vweird.f32 %v624
        %vm632 = vmor %vm630, %vm631
        %v633 = vsel %vm632, %v624, %v629
        %v634 = vrsqrt.pop %v492
        %v635 = vmul.f32 %v634, %v492
        %v636 = vmul.f32 %v635, %v634
        %v637 = vmul.f32 0.5, %v636
        %v638 = vsub.f32 1.5, %v637
        %v639 = vmul.f32 %v634, %v638
        %vm640 = vweird.f32 %v492
        %vm641 = vweird.f32 %v634
        %vm642 = vmor %vm640, %vm641
        %v643 = vsel %vm642, %v634, %v639
        %v644 = vrsqrt.pop %v493
        %v645 = vmul.f32 %v644, %v493
        %v646 = vmul.f32 %v645, %v644
        %v647 = vmul.f32 0.5, %v646
        %v648 = vsub.f32 1.5, %v647
        %v649 = vmul.f32 %v644, %v648
        %vm650 = vweird.f32 %v493
        %vm651 = vweird.f32 %v644
        %vm652 = vmor %vm650, %vm651
        %v653 = vsel %vm652, %v644, %v649
        %v654 = vmul.f32 %v366, %v503
        %v655 = vmul.f32 %v367, %v503
        %v656 = vmul.f32 %v368, %v513
        %v657 = vmul.f32 %v369, %v513
        %v658 = vmul.f32 %v370, %v523
        %v659 = vmul.f32 %v371, %v523
        %v660 = vmul.f32 %v372, %v533
        %v661 = vmul.f32 %v373, %v533
        %v662 = vmul.f32 %v374, %v543
        %v663 = vmul.f32 %v375, %v543
        %v664 = vmul.f32 %v376, %v553
        %v665 = vmul.f32 %v377, %v553
        %v666 = vmul.f32 %v378, %v563
        %v667 = vmul.f32 %v379, %v563
        %v668 = vmul.f32 %v380, %v573
        %v669 = vmul.f32 %v381, %v573
        %v670 = vmul.f32 %v382, %v583
        %v671 = vmul.f32 %v383, %v583
        %v672 = vmul.f32 %v384, %v593
        %v673 = vmul.f32 %v385, %v593
        %v674 = vmul.f32 %v386, %v603
        %v675 = vmul.f32 %v387, %v603
        %v676 = vmul.f32 %v388, %v613
        %v677 = vmul.f32 %v389, %v613
        %v678 = vmul.f32 %v390, %v623
        %v679 = vmul.f32 %v391, %v623
        %v680 = vmul.f32 %v392, %v633
        %v681 = vmul.f32 %v393, %v633
        %v682 = vmul.f32 %v394, %v643
        %v683 = vmul.f32 %v395, %v643
        %v684 = vmul.f32 %v396, %v653
        %v685 = vmul.f32 %v397, %v653
        %v686 = vld [vmem:[#allocation5] sm:$0xff]
        %v687 = vld [vmem:[#allocation5 + $0x8] sm:$0xff]
        %v688 = vld [vmem:[#allocation5 + $0x10] sm:$0xff]
        %v689 = vld [vmem:[#allocation5 + $0x18] sm:$0xff]
        %v690 = vld [vmem:[#allocation5 + $0x20] sm:$0xff]
        %v691 = vld [vmem:[#allocation5 + $0x28] sm:$0xff]
        %v692 = vld [vmem:[#allocation5 + $0x30] sm:$0xff]
        %v693 = vld [vmem:[#allocation5 + $0x38] sm:$0xff]
        %v694 = vld [vmem:[#allocation5 + $0x40] sm:$0xff]
        %v695 = vld [vmem:[#allocation5 + $0x48] sm:$0xff]
        %v696 = vld [vmem:[#allocation5 + $0x50] sm:$0xff]
        %v697 = vld [vmem:[#allocation5 + $0x58] sm:$0xff]
        %v698 = vld [vmem:[#allocation5 + $0x60] sm:$0xff]
        %v699 = vld [vmem:[#allocation5 + $0x68] sm:$0xff]
        %v700 = vld [vmem:[#allocation5 + $0x70] sm:$0xff]
        %v701 = vld [vmem:[#allocation5 + $0x78] sm:$0xff]
        %v702 = vld [vmem:[#allocation5 + $0x80] sm:$0xff]
        %v703 = vld [vmem:[#allocation5 + $0x88] sm:$0xff]
        %v704 = vld [vmem:[#allocation5 + $0x90] sm:$0xff]
        %v705 = vld [vmem:[#allocation5 + $0x98] sm:$0xff]
        %v706 = vld [vmem:[#allocation5 + $0xa0] sm:$0xff]
        %v707 = vld [vmem:[#allocation5 + $0xa8] sm:$0xff]
        %v708 = vld [vmem:[#allocation5 + $0xb0] sm:$0xff]
        %v709 = vld [vmem:[#allocation5 + $0xb8] sm:$0xff]
        %v710 = vld [vmem:[#allocation5 + $0xc0] sm:$0xff]
        %v711 = vld [vmem:[#allocation5 + $0xc8] sm:$0xff]
        %v712 = vld [vmem:[#allocation5 + $0xd0] sm:$0xff]
        %v713 = vld [vmem:[#allocation5 + $0xd8] sm:$0xff]
        %v714 = vld [vmem:[#allocation5 + $0xe0] sm:$0xff]
        %v715 = vld [vmem:[#allocation5 + $0xe8] sm:$0xff]
        %v716 = vld [vmem:[#allocation5 + $0xf0] sm:$0xff]
        %v717 = vld [vmem:[#allocation5 + $0xf8] sm:$0xff]
        %v718 = vld [vmem:[%s2] sm:$0x1]
        %v720 = vperm.slane %v718, 0
        %722 = vmatpush.msra.mxu0 %v701
        %723 = vmatpush.msra.mxu0 %v700
        %724 = vmatpush.msra.mxu0 %v699
        %725 = vmatpush.msra.mxu0 %v698
        %726 = vmatpush.msra.mxu0 %v697
        %727 = vmatpush.msra.mxu0 %v696
        %728 = vmatpush.msra.mxu0 %v695
        %729 = vmatpush.msra.mxu0 %v694
        %730 = vmatpush.msra.mxu0 %v693
        %731 = vmatpush.msra.mxu0 %v692
        %732 = vmatpush.msra.mxu0 %v691
        %733 = vmatpush.msra.mxu0 %v690
        %734 = vmatpush.msra.mxu0 %v689
        %735 = vmatpush.msra.mxu0 %v688
        %736 = vmatpush.msra.mxu0 %v687
        %737 = vmatpush.msra.mxu0 %v686
        %738 = vmatmul.f32.gmra.mxu0 %v654
        %v739 = vpop.f32.mrf.mxu0
        %v740 = vadd.f32 %v720, %v739
        %741 = vmatmul.f32.gmra.mxu0 %v656
        %v742 = vpop.f32.mrf.mxu0
        %v743 = vadd.f32 %v720, %v742
        %744 = vmatmul.f32.gmra.mxu0 %v658
        %v745 = vpop.f32.mrf.mxu0
        %v746 = vadd.f32 %v720, %v745
        %747 = vmatmul.f32.gmra.mxu0 %v660
        %v748 = vpop.f32.mrf.mxu0
        %v749 = vadd.f32 %v720, %v748
        %750 = vmatmul.f32.gmra.mxu0 %v662
        %v751 = vpop.f32.mrf.mxu0
        %v752 = vadd.f32 %v720, %v751
        %753 = vmatmul.f32.gmra.mxu0 %v664
        %v754 = vpop.f32.mrf.mxu0
        %v755 = vadd.f32 %v720, %v754
        %756 = vmatmul.f32.gmra.mxu0 %v666
        %v757 = vpop.f32.mrf.mxu0
        %v758 = vadd.f32 %v720, %v757
        %759 = vmatmul.f32.gmra.mxu0 %v668
        %v760 = vpop.f32.mrf.mxu0
        %v761 = vadd.f32 %v720, %v760
        %762 = vmatmul.f32.gmra.mxu0 %v670
        %v763 = vpop.f32.mrf.mxu0
        %v764 = vadd.f32 %v720, %v763
        %765 = vmatmul.f32.gmra.mxu0 %v672
        %v766 = vpop.f32.mrf.mxu0
        %v767 = vadd.f32 %v720, %v766
        %768 = vmatmul.f32.gmra.mxu0 %v674
        %v769 = vpop.f32.mrf.mxu0
        %v770 = vadd.f32 %v720, %v769
        %771 = vmatmul.f32.gmra.mxu0 %v676
        %v772 = vpop.f32.mrf.mxu0
        %v773 = vadd.f32 %v720, %v772
        %774 = vmatmul.f32.gmra.mxu0 %v678
        %v775 = vpop.f32.mrf.mxu0
        %v776 = vadd.f32 %v720, %v775
        %777 = vmatmul.f32.gmra.mxu0 %v680
        %v778 = vpop.f32.mrf.mxu0
        %v779 = vadd.f32 %v720, %v778
        %780 = vmatmul.f32.gmra.mxu0 %v682
        %v781 = vpop.f32.mrf.mxu0
        %v782 = vadd.f32 %v720, %v781
        %783 = vmatmul.f32.gmra.mxu0 %v684
        %v784 = vpop.f32.mrf.mxu0
        %v785 = vadd.f32 %v720, %v784
        %786 = vdwg.mxu0
        %787 = vmatpush.msra.mxu0 %v717
        %788 = vmatpush.msra.mxu0 %v716
        %789 = vmatpush.msra.mxu0 %v715
        %790 = vmatpush.msra.mxu0 %v714
        %791 = vmatpush.msra.mxu0 %v713
        %792 = vmatpush.msra.mxu0 %v712
        %793 = vmatpush.msra.mxu0 %v711
        %794 = vmatpush.msra.mxu0 %v710
        %795 = vmatpush.msra.mxu0 %v709
        %796 = vmatpush.msra.mxu0 %v708
        %797 = vmatpush.msra.mxu0 %v707
        %798 = vmatpush.msra.mxu0 %v706
        %799 = vmatpush.msra.mxu0 %v705
        %800 = vmatpush.msra.mxu0 %v704
        %801 = vmatpush.msra.mxu0 %v703
        %802 = vmatpush.msra.mxu0 %v702
        %803 = vmatmul.f32.gmra.mxu0 %v655
        %v804 = vpop.f32.mrf.mxu0
        %v805 = vadd.f32 %v740, %v804
        %806 = vmatmul.f32.gmra.mxu0 %v657
        %v807 = vpop.f32.mrf.mxu0
        %v808 = vadd.f32 %v743, %v807
        %809 = vmatmul.f32.gmra.mxu0 %v659
        %v810 = vpop.f32.mrf.mxu0
        %v811 = vadd.f32 %v746, %v810
        %812 = vmatmul.f32.gmra.mxu0 %v661
        %v813 = vpop.f32.mrf.mxu0
        %v814 = vadd.f32 %v749, %v813
        %815 = vmatmul.f32.gmra.mxu0 %v663
        %v816 = vpop.f32.mrf.mxu0
        %v817 = vadd.f32 %v752, %v816
        %818 = vmatmul.f32.gmra.mxu0 %v665
        %v819 = vpop.f32.mrf.mxu0
        %v820 = vadd.f32 %v755, %v819
        %821 = vmatmul.f32.gmra.mxu0 %v667
        %v822 = vpop.f32.mrf.mxu0
        %v823 = vadd.f32 %v758, %v822
        %824 = vmatmul.f32.gmra.mxu0 %v669
        %v825 = vpop.f32.mrf.mxu0
        %v826 = vadd.f32 %v761, %v825
        %827 = vmatmul.f32.gmra.mxu0 %v671
        %v828 = vpop.f32.mrf.mxu0
        %v829 = vadd.f32 %v764, %v828
        %830 = vmatmul.f32.gmra.mxu0 %v673
        %v831 = vpop.f32.mrf.mxu0
        %v832 = vadd.f32 %v767, %v831
        %833 = vmatmul.f32.gmra.mxu0 %v675
        %v834 = vpop.f32.mrf.mxu0
        %v835 = vadd.f32 %v770, %v834
        %836 = vmatmul.f32.gmra.mxu0 %v677
        %v837 = vpop.f32.mrf.mxu0
        %v838 = vadd.f32 %v773, %v837
        %839 = vmatmul.f32.gmra.mxu0 %v679
        %v840 = vpop.f32.mrf.mxu0
        %v841 = vadd.f32 %v776, %v840
        %842 = vmatmul.f32.gmra.mxu0 %v681
        %v843 = vpop.f32.mrf.mxu0
        %v844 = vadd.f32 %v779, %v843
        %845 = vmatmul.f32.gmra.mxu0 %v683
        %v846 = vpop.f32.mrf.mxu0
        %v847 = vadd.f32 %v782, %v846
        %848 = vmatmul.f32.gmra.mxu0 %v685
        %v849 = vpop.f32.mrf.mxu0
        %v850 = vadd.f32 %v785, %v849
        %851 = vdwg.mxu0
        %v852 = vtanh.pop %v805
        %v853 = vtanh.pop %v808
        %v854 = vtanh.pop %v811
        %v855 = vtanh.pop %v814
        %v856 = vtanh.pop %v817
        %v857 = vtanh.pop %v820
        %v858 = vtanh.pop %v823
        %v859 = vtanh.pop %v826
        %v860 = vtanh.pop %v829
        %v861 = vtanh.pop %v832
        %v862 = vtanh.pop %v835
        %v863 = vtanh.pop %v838
        %v864 = vtanh.pop %v841
        %v865 = vtanh.pop %v844
        %v866 = vtanh.pop %v847
        %v867 = vtanh.pop %v850
        %v868 = vld [vmem:[#allocation7] sm:$0xff]
        %v869 = vld [vmem:[#allocation7 + $0x8] sm:$0xff]
        %v870 = vld [vmem:[#allocation7 + $0x10] sm:$0xff]
        %v871 = vld [vmem:[#allocation7 + $0x18] sm:$0xff]
        %v872 = vld [vmem:[#allocation7 + $0x20] sm:$0xff]
        %v873 = vld [vmem:[#allocation7 + $0x28] sm:$0xff]
        %v874 = vld [vmem:[#allocation7 + $0x30] sm:$0xff]
        %v875 = vld [vmem:[#allocation7 + $0x38] sm:$0xff]
        %v876 = vld [vmem:[#allocation7 + $0x40] sm:$0xff]
        %v877 = vld [vmem:[#allocation7 + $0x48] sm:$0xff]
        %v878 = vld [vmem:[#allocation7 + $0x50] sm:$0xff]
        %v879 = vld [vmem:[#allocation7 + $0x58] sm:$0xff]
        %v880 = vld [vmem:[#allocation7 + $0x60] sm:$0xff]
        %v881 = vld [vmem:[#allocation7 + $0x68] sm:$0xff]
        %v882 = vld [vmem:[#allocation7 + $0x70] sm:$0xff]
        %v883 = vld [vmem:[#allocation7 + $0x78] sm:$0xff]
        %v884 = vld [vmem:[#allocation8] sm:$0x1]
        %v886 = vperm.slane %v884, 0
        %888 = vmatpush.msra.mxu0 %v883
        %889 = vmatpush.msra.mxu0 %v882
        %890 = vmatpush.msra.mxu0 %v881
        %891 = vmatpush.msra.mxu0 %v880
        %892 = vmatpush.msra.mxu0 %v879
        %893 = vmatpush.msra.mxu0 %v878
        %894 = vmatpush.msra.mxu0 %v877
        %895 = vmatpush.msra.mxu0 %v876
        %896 = vmatpush.msra.mxu0 %v875
        %897 = vmatpush.msra.mxu0 %v874
        %898 = vmatpush.msra.mxu0 %v873
        %899 = vmatpush.msra.mxu0 %v872
        %900 = vmatpush.msra.mxu0 %v871
        %901 = vmatpush.msra.mxu0 %v870
        %902 = vmatpush.msra.mxu0 %v869
        %903 = vmatpush.msra.mxu0 %v868
        %904 = vmatmul.f32.gmra.mxu0 %v852
        %v905 = vpop.f32.mrf.mxu0
        %v906 = vadd.f32 %v886, %v905
        %907 = vmatmul.f32.gmra.mxu0 %v853
        %v908 = vpop.f32.mrf.mxu0
        %v909 = vadd.f32 %v886, %v908
        %910 = vmatmul.f32.gmra.mxu0 %v854
        %v911 = vpop.f32.mrf.mxu0
        %v912 = vadd.f32 %v886, %v911
        %913 = vmatmul.f32.gmra.mxu0 %v855
        %v914 = vpop.f32.mrf.mxu0
        %v915 = vadd.f32 %v886, %v914
        %916 = vmatmul.f32.gmra.mxu0 %v856
        %v917 = vpop.f32.mrf.mxu0
        %v918 = vadd.f32 %v886, %v917
        %919 = vmatmul.f32.gmra.mxu0 %v857
        %v920 = vpop.f32.mrf.mxu0
        %v921 = vadd.f32 %v886, %v920
        %922 = vmatmul.f32.gmra.mxu0 %v858
        %v923 = vpop.f32.mrf.mxu0
        %v924 = vadd.f32 %v886, %v923
        %925 = vmatmul.f32.gmra.mxu0 %v859
        %v926 = vpop.f32.mrf.mxu0
        %v927 = vadd.f32 %v886, %v926
        %928 = vmatmul.f32.gmra.mxu0 %v860
        %v929 = vpop.f32.mrf.mxu0
        %v930 = vadd.f32 %v886, %v929
        %931 = vmatmul.f32.gmra.mxu0 %v861
        %v932 = vpop.f32.mrf.mxu0
        %v933 = vadd.f32 %v886, %v932
        %934 = vmatmul.f32.gmra.mxu0 %v862
        %v935 = vpop.f32.mrf.mxu0
        %v936 = vadd.f32 %v886, %v935
        %937 = vmatmul.f32.gmra.mxu0 %v863
        %v938 = vpop.f32.mrf.mxu0
        %v939 = vadd.f32 %v886, %v938
        %940 = vmatmul.f32.gmra.mxu0 %v864
        %v941 = vpop.f32.mrf.mxu0
        %v942 = vadd.f32 %v886, %v941
        %943 = vmatmul.f32.gmra.mxu0 %v865
        %v944 = vpop.f32.mrf.mxu0
        %v945 = vadd.f32 %v886, %v944
        %946 = vmatmul.f32.gmra.mxu0 %v866
        %v947 = vpop.f32.mrf.mxu0
        %v948 = vadd.f32 %v886, %v947
        %949 = vmatmul.f32.gmra.mxu0 %v867
        %v950 = vpop.f32.mrf.mxu0
        %v951 = vadd.f32 %v886, %v950
        %952 = vdwg.mxu0
        %v953 = vtanh.pop %v906
        %v954 = vtanh.pop %v909
        %v955 = vtanh.pop %v912
        %v956 = vtanh.pop %v915
        %v957 = vtanh.pop %v918
        %v958 = vtanh.pop %v921
        %v959 = vtanh.pop %v924
        %v960 = vtanh.pop %v927
        %v961 = vtanh.pop %v930
        %v962 = vtanh.pop %v933
        %v963 = vtanh.pop %v936
        %v964 = vtanh.pop %v939
        %v965 = vtanh.pop %v942
        %v966 = vtanh.pop %v945
        %v967 = vtanh.pop %v948
        %v968 = vtanh.pop %v951
        %v969 = vld [vmem:[#allocation10] sm:$0xff]
        %v970 = vld [vmem:[#allocation10 + $0x8] sm:$0xff]
        %v971 = vld [vmem:[#allocation10 + $0x10] sm:$0xff]
        %v972 = vld [vmem:[#allocation10 + $0x18] sm:$0xff]
        %v973 = vld [vmem:[#allocation10 + $0x20] sm:$0xff]
        %v974 = vld [vmem:[#allocation10 + $0x28] sm:$0xff]
        %v975 = vld [vmem:[#allocation10 + $0x30] sm:$0xff]
        %v976 = vld [vmem:[#allocation10 + $0x38] sm:$0xff]
        %v977 = vld [vmem:[#allocation10 + $0x40] sm:$0xff]
        %v978 = vld [vmem:[#allocation10 + $0x48] sm:$0xff]
        %v979 = vld [vmem:[#allocation10 + $0x50] sm:$0xff]
        %v980 = vld [vmem:[#allocation10 + $0x58] sm:$0xff]
        %v981 = vld [vmem:[#allocation10 + $0x60] sm:$0xff]
        %v982 = vld [vmem:[#allocation10 + $0x68] sm:$0xff]
        %v983 = vld [vmem:[#allocation10 + $0x70] sm:$0xff]
        %v984 = vld [vmem:[#allocation10 + $0x78] sm:$0xff]
        %v985 = vld [vmem:[#allocation10 + $0x80] sm:$0xff]
        %v986 = vld [vmem:[#allocation10 + $0x88] sm:$0xff]
        %v987 = vld [vmem:[#allocation10 + $0x90] sm:$0xff]
        %v988 = vld [vmem:[#allocation10 + $0x98] sm:$0xff]
        %v989 = vld [vmem:[#allocation10 + $0xa0] sm:$0xff]
        %v990 = vld [vmem:[#allocation10 + $0xa8] sm:$0xff]
        %v991 = vld [vmem:[#allocation10 + $0xb0] sm:$0xff]
        %v992 = vld [vmem:[#allocation10 + $0xb8] sm:$0xff]
        %v993 = vld [vmem:[#allocation10 + $0xc0] sm:$0xff]
        %v994 = vld [vmem:[#allocation10 + $0xc8] sm:$0xff]
        %v995 = vld [vmem:[#allocation10 + $0xd0] sm:$0xff]
        %v996 = vld [vmem:[#allocation10 + $0xd8] sm:$0xff]
        %v997 = vld [vmem:[#allocation10 + $0xe0] sm:$0xff]
        %v998 = vld [vmem:[#allocation10 + $0xe8] sm:$0xff]
        %v999 = vld [vmem:[#allocation10 + $0xf0] sm:$0xff]
        %v1000 = vld [vmem:[#allocation10 + $0xf8] sm:$0xff]
        %v1001 = vld [vmem:[%s6] sm:$0x3]
        %v1003 = vperm.slane %v1001, 0
        %v1004 = vperm.slane %v1001, 1
        %1007 = vmatpush.msra.mxu0 %v999
        %1008 = vmatpush.msra.mxu0 %v997
        %1009 = vmatpush.msra.mxu0 %v995
        %1010 = vmatpush.msra.mxu0 %v993
        %1011 = vmatpush.msra.mxu0 %v991
        %1012 = vmatpush.msra.mxu0 %v989
        %1013 = vmatpush.msra.mxu0 %v987
        %1014 = vmatpush.msra.mxu0 %v985
        %1015 = vmatpush.msra.mxu0 %v983
        %1016 = vmatpush.msra.mxu0 %v981
        %1017 = vmatpush.msra.mxu0 %v979
        %1018 = vmatpush.msra.mxu0 %v977
        %1019 = vmatpush.msra.mxu0 %v975
        %1020 = vmatpush.msra.mxu0 %v973
        %1021 = vmatpush.msra.mxu0 %v971
        %1022 = vmatpush.msra.mxu0 %v969
        %1023 = vmatmul.f32.gmra.mxu0 %v953
        %v1024 = vpop.f32.mrf.mxu0
        %v1025 = vadd.f32 %v1003, %v1024
        %1026 = vmatmul.f32.gmra.mxu0 %v954
        %v1027 = vpop.f32.mrf.mxu0
        %v1028 = vadd.f32 %v1003, %v1027
        %1029 = vmatmul.f32.gmra.mxu0 %v955
        %v1030 = vpop.f32.mrf.mxu0
        %v1031 = vadd.f32 %v1003, %v1030
        %1032 = vmatmul.f32.gmra.mxu0 %v956
        %v1033 = vpop.f32.mrf.mxu0
        %v1034 = vadd.f32 %v1003, %v1033
        %1035 = vmatmul.f32.gmra.mxu0 %v957
        %v1036 = vpop.f32.mrf.mxu0
        %v1037 = vadd.f32 %v1003, %v1036
        %1038 = vmatmul.f32.gmra.mxu0 %v958
        %v1039 = vpop.f32.mrf.mxu0
        %v1040 = vadd.f32 %v1003, %v1039
        %1041 = vmatmul.f32.gmra.mxu0 %v959
        %v1042 = vpop.f32.mrf.mxu0
        %v1043 = vadd.f32 %v1003, %v1042
        %1044 = vmatmul.f32.gmra.mxu0 %v960
        %v1045 = vpop.f32.mrf.mxu0
        %v1046 = vadd.f32 %v1003, %v1045
        %1047 = vmatmul.f32.gmra.mxu0 %v961
        %v1048 = vpop.f32.mrf.mxu0
        %v1049 = vadd.f32 %v1003, %v1048
        %1050 = vmatmul.f32.gmra.mxu0 %v962
        %v1051 = vpop.f32.mrf.mxu0
        %v1052 = vadd.f32 %v1003, %v1051
        %1053 = vmatmul.f32.gmra.mxu0 %v963
        %v1054 = vpop.f32.mrf.mxu0
        %v1055 = vadd.f32 %v1003, %v1054
        %1056 = vmatmul.f32.gmra.mxu0 %v964
        %v1057 = vpop.f32.mrf.mxu0
        %v1058 = vadd.f32 %v1003, %v1057
        %1059 = vmatmul.f32.gmra.mxu0 %v965
        %v1060 = vpop.f32.mrf.mxu0
        %v1061 = vadd.f32 %v1003, %v1060
        %1062 = vmatmul.f32.gmra.mxu0 %v966
        %v1063 = vpop.f32.mrf.mxu0
        %v1064 = vadd.f32 %v1003, %v1063
        %1065 = vmatmul.f32.gmra.mxu0 %v967
        %v1066 = vpop.f32.mrf.mxu0
        %v1067 = vadd.f32 %v1003, %v1066
        %1068 = vmatmul.f32.gmra.mxu0 %v968
        %v1069 = vpop.f32.mrf.mxu0
        %v1070 = vadd.f32 %v1003, %v1069
        %1071 = vdwg.mxu0
        %1072 = vmatpush.msra.mxu0 %v1000
        %1073 = vmatpush.msra.mxu0 %v998
        %1074 = vmatpush.msra.mxu0 %v996
        %1075 = vmatpush.msra.mxu0 %v994
        %1076 = vmatpush.msra.mxu0 %v992
        %1077 = vmatpush.msra.mxu0 %v990
        %1078 = vmatpush.msra.mxu0 %v988
        %1079 = vmatpush.msra.mxu0 %v986
        %1080 = vmatpush.msra.mxu0 %v984
        %1081 = vmatpush.msra.mxu0 %v982
        %1082 = vmatpush.msra.mxu0 %v980
        %1083 = vmatpush.msra.mxu0 %v978
        %1084 = vmatpush.msra.mxu0 %v976
        %1085 = vmatpush.msra.mxu0 %v974
        %1086 = vmatpush.msra.mxu0 %v972
        %1087 = vmatpush.msra.mxu0 %v970
        %1088 = vmatmul.f32.gmra.mxu0 %v953
        %v1089 = vpop.f32.mrf.mxu0
        %v1090 = vadd.f32 %v1004, %v1089
        %1091 = vmatmul.f32.gmra.mxu0 %v954
        %v1092 = vpop.f32.mrf.mxu0
        %v1093 = vadd.f32 %v1004, %v1092
        %1094 = vmatmul.f32.gmra.mxu0 %v955
        %v1095 = vpop.f32.mrf.mxu0
        %v1096 = vadd.f32 %v1004, %v1095
        %1097 = vmatmul.f32.gmra.mxu0 %v956
        %v1098 = vpop.f32.mrf.mxu0
        %v1099 = vadd.f32 %v1004, %v1098
        %1100 = vmatmul.f32.gmra.mxu0 %v957
        %v1101 = vpop.f32.mrf.mxu0
        %v1102 = vadd.f32 %v1004, %v1101
        %1103 = vmatmul.f32.gmra.mxu0 %v958
        %v1104 = vpop.f32.mrf.mxu0
        %v1105 = vadd.f32 %v1004, %v1104
        %1106 = vmatmul.f32.gmra.mxu0 %v959
        %v1107 = vpop.f32.mrf.mxu0
        %v1108 = vadd.f32 %v1004, %v1107
        %1109 = vmatmul.f32.gmra.mxu0 %v960
        %v1110 = vpop.f32.mrf.mxu0
        %v1111 = vadd.f32 %v1004, %v1110
        %1112 = vmatmul.f32.gmra.mxu0 %v961
        %v1113 = vpop.f32.mrf.mxu0
        %v1114 = vadd.f32 %v1004, %v1113
        %1115 = vmatmul.f32.gmra.mxu0 %v962
        %v1116 = vpop.f32.mrf.mxu0
        %v1117 = vadd.f32 %v1004, %v1116
        %1118 = vmatmul.f32.gmra.mxu0 %v963
        %v1119 = vpop.f32.mrf.mxu0
        %v1120 = vadd.f32 %v1004, %v1119
        %1121 = vmatmul.f32.gmra.mxu0 %v964
        %v1122 = vpop.f32.mrf.mxu0
        %v1123 = vadd.f32 %v1004, %v1122
        %1124 = vmatmul.f32.gmra.mxu0 %v965
        %v1125 = vpop.f32.mrf.mxu0
        %v1126 = vadd.f32 %v1004, %v1125
        %1127 = vmatmul.f32.gmra.mxu0 %v966
        %v1128 = vpop.f32.mrf.mxu0
        %v1129 = vadd.f32 %v1004, %v1128
        %1130 = vmatmul.f32.gmra.mxu0 %v967
        %v1131 = vpop.f32.mrf.mxu0
        %v1132 = vadd.f32 %v1004, %v1131
        %1133 = vmatmul.f32.gmra.mxu0 %v968
        %v1134 = vpop.f32.mrf.mxu0
        %v1135 = vadd.f32 %v1004, %v1134
        %1136 = vdwg.mxu0
        %vm1137 = vcmp.ne.f32.partialorder %v366, 0.0
        %vm1138 = vcmp.ne.f32.partialorder %v367, 0.0
        %vm1139 = vcmp.ne.f32.partialorder %v368, 0.0
        %vm1140 = vcmp.ne.f32.partialorder %v369, 0.0
        %vm1141 = vcmp.ne.f32.partialorder %v370, 0.0
        %vm1142 = vcmp.ne.f32.partialorder %v371, 0.0
        %vm1143 = vcmp.ne.f32.partialorder %v372, 0.0
        %vm1144 = vcmp.ne.f32.partialorder %v373, 0.0
        %vm1145 = vcmp.ne.f32.partialorder %v374, 0.0
        %vm1146 = vcmp.ne.f32.partialorder %v375, 0.0
        %vm1147 = vcmp.ne.f32.partialorder %v376, 0.0
        %vm1148 = vcmp.ne.f32.partialorder %v377, 0.0
        %vm1149 = vcmp.ne.f32.partialorder %v378, 0.0
        %vm1150 = vcmp.ne.f32.partialorder %v379, 0.0
        %vm1151 = vcmp.ne.f32.partialorder %v380, 0.0
        %vm1152 = vcmp.ne.f32.partialorder %v381, 0.0
        %vm1153 = vcmp.ne.f32.partialorder %v382, 0.0
        %vm1154 = vcmp.ne.f32.partialorder %v383, 0.0
        %vm1155 = vcmp.ne.f32.partialorder %v384, 0.0
        %vm1156 = vcmp.ne.f32.partialorder %v385, 0.0
        %vm1157 = vcmp.ne.f32.partialorder %v386, 0.0
        %vm1158 = vcmp.ne.f32.partialorder %v387, 0.0
        %vm1159 = vcmp.ne.f32.partialorder %v388, 0.0
        %vm1160 = vcmp.ne.f32.partialorder %v389, 0.0
        %vm1161 = vcmp.ne.f32.partialorder %v390, 0.0
        %vm1162 = vcmp.ne.f32.partialorder %v391, 0.0
        %vm1163 = vcmp.ne.f32.partialorder %v392, 0.0
        %vm1164 = vcmp.ne.f32.partialorder %v393, 0.0
        %vm1165 = vcmp.ne.f32.partialorder %v394, 0.0
        %vm1166 = vcmp.ne.f32.partialorder %v395, 0.0
        %vm1167 = vcmp.ne.f32.partialorder %v396, 0.0
        %vm1168 = vcmp.ne.f32.partialorder %v397, 0.0
        %v1169 = vsel %vm1137, -inf, %v1025
        %v1170 = vsel %vm1138, -inf, %v1090
        %v1171 = vsel %vm1139, -inf, %v1028
        %v1172 = vsel %vm1140, -inf, %v1093
        %v1173 = vsel %vm1141, -inf, %v1031
        %v1174 = vsel %vm1142, -inf, %v1096
        %v1175 = vsel %vm1143, -inf, %v1034
        %v1176 = vsel %vm1144, -inf, %v1099
        %v1177 = vsel %vm1145, -inf, %v1037
        %v1178 = vsel %vm1146, -inf, %v1102
        %v1179 = vsel %vm1147, -inf, %v1040
        %v1180 = vsel %vm1148, -inf, %v1105
        %v1181 = vsel %vm1149, -inf, %v1043
        %v1182 = vsel %vm1150, -inf, %v1108
        %v1183 = vsel %vm1151, -inf, %v1046
        %v1184 = vsel %vm1152, -inf, %v1111
        %v1185 = vsel %vm1153, -inf, %v1049
        %v1186 = vsel %vm1154, -inf, %v1114
        %v1187 = vsel %vm1155, -inf, %v1052
        %v1188 = vsel %vm1156, -inf, %v1117
        %v1189 = vsel %vm1157, -inf, %v1055
        %v1190 = vsel %vm1158, -inf, %v1120
        %v1191 = vsel %vm1159, -inf, %v1058
        %v1192 = vsel %vm1160, -inf, %v1123
        %v1193 = vsel %vm1161, -inf, %v1061
        %v1194 = vsel %vm1162, -inf, %v1126
        %v1195 = vsel %vm1163, -inf, %v1064
        %v1196 = vsel %vm1164, -inf, %v1129
        %v1197 = vsel %vm1165, -inf, %v1067
        %v1198 = vsel %vm1166, -inf, %v1132
        %v1199 = vsel %vm1167, -inf, %v1070
        %v1200 = vsel %vm1168, -inf, %v1135
        %1201 = vst [vmem:[%s363] sm:$0xff] %v1169
        %1202 = vst [vmem:[%s363 + $0x8] sm:$0xff] %v1170
        %1203 = vst [vmem:[%s363 + $0x10] sm:$0xff] %v1171
        %1204 = vst [vmem:[%s363 + $0x18] sm:$0xff] %v1172
        %1205 = vst [vmem:[%s363 + $0x20] sm:$0xff] %v1173
        %1206 = vst [vmem:[%s363 + $0x28] sm:$0xff] %v1174
        %1207 = vst [vmem:[%s363 + $0x30] sm:$0xff] %v1175
        %1208 = vst [vmem:[%s363 + $0x38] sm:$0xff] %v1176
        %1209 = vst [vmem:[%s363 + $0x40] sm:$0xff] %v1177
        %1210 = vst [vmem:[%s363 + $0x48] sm:$0xff] %v1178
        %1211 = vst [vmem:[%s363 + $0x50] sm:$0xff] %v1179
        %1212 = vst [vmem:[%s363 + $0x58] sm:$0xff] %v1180
        %1213 = vst [vmem:[%s363 + $0x60] sm:$0xff] %v1181
        %1214 = vst [vmem:[%s363 + $0x68] sm:$0xff] %v1182
        %1215 = vst [vmem:[%s363 + $0x70] sm:$0xff] %v1183
        %1216 = vst [vmem:[%s363 + $0x78] sm:$0xff] %v1184
        %1217 = vst [vmem:[%s363 + $0x80] sm:$0xff] %v1185
        %1218 = vst [vmem:[%s363 + $0x88] sm:$0xff] %v1186
        %1219 = vst [vmem:[%s363 + $0x90] sm:$0xff] %v1187
        %1220 = vst [vmem:[%s363 + $0x98] sm:$0xff] %v1188
        %1221 = vst [vmem:[%s363 + $0xa0] sm:$0xff] %v1189
        %1222 = vst [vmem:[%s363 + $0xa8] sm:$0xff] %v1190
        %1223 = vst [vmem:[%s363 + $0xb0] sm:$0xff] %v1191
        %1224 = vst [vmem:[%s363 + $0xb8] sm:$0xff] %v1192
        %1225 = vst [vmem:[%s363 + $0xc0] sm:$0xff] %v1193
        %1226 = vst [vmem:[%s363 + $0xc8] sm:$0xff] %v1194
        %1227 = vst [vmem:[%s363 + $0xd0] sm:$0xff] %v1195
        %1228 = vst [vmem:[%s363 + $0xd8] sm:$0xff] %v1196
        %1229 = vst [vmem:[%s363 + $0xe0] sm:$0xff] %v1197
        %1230 = vst [vmem:[%s363 + $0xe8] sm:$0xff] %v1198
        %1231 = vst [vmem:[%s363 + $0xf0] sm:$0xff] %v1199
        %1232 = vst [vmem:[%s363 + $0xf8] sm:$0xff] %v1200
        %s1233 = sand.u32 %s186, 1
        %s1234 = scalar_lea.sflag [#allocation4], %s1233
        %s1235 = sand.u32 %s186, 1
        %s1236 = smul.addr %s1235, 256
        %s1237 = scalar_lea.vmem [#allocation11], %s1236
        // Predicated region
        $region69: #{tpu_custom_call.1} parent=47 // pred_check
          %p1238 = pneg %p196
        $region70: #{tpu_custom_call.1} parent=47 // pred_check_branch
          %1240 = sbr.rel (%p1238) target = $region72
        $region71: #{tpu_custom_call.1} parent=47 // pred_region
          %s1241 = smul.u32 16, %s26
          %1243 = vsyncadd %s1234, 0
          %s1244 = smul.addr %s1241, 2
          %s1245 = smul.addr %s1244, 8
          %s1246 = scalar_lea.hbm %s7, %s1245
          %s1247 = sshll.u32 %s1237, 4
          %s1248 = int_to_ptr.vmem [resolvable:$true] %s1247
          %s1249 = sshll.u32 %s1246, 4
          %s1250 = int_to_ptr.hbm [resolvable:$true] %s1249
          %1255 = dma.vmem_to_hbm [thread:$0]  %s1248, 4096, %s1250, %s1234, 256, 256, 16
        $region72: #{tpu_custom_call.1} parent=47 // pred_fallthru
          _
      $region48: #{tpu_custom_call.1} parent=5 // pred_fallthru
        _
      %p1256 = scmp.le.s32.totalorder 2, %s21
      // Predicated region
      $region73: #{tpu_custom_call.1} parent=5 // pred_check
        %p1257 = pneg %p1256
      $region74: #{tpu_custom_call.1} parent=5 // pred_check_branch
        %1259 = sbr.rel (%p1257) target = $region76
      $region75: #{tpu_custom_call.1} parent=5 // pred_region
        %s1260 = ssub.s32 %s21, 2
        // Predicated region
        $region77: #{tpu_custom_call.1} parent=75 // pred_check
          %p1261 = pneg %p202
        $region78: #{tpu_custom_call.1} parent=75 // pred_check_branch
          %1263 = sbr.rel (%p1261) target = $region80
        $region79: #{tpu_custom_call.1} parent=75 // pred_region
          %s1264 = sand.u32 %s187, 1
          %s1265 = scalar_lea.sflag [#allocation4], %s1264
          %s1266 = sand.u32 %s187, 1
          %s1267 = smul.addr %s1266, 256
          %s1268 = scalar_lea.vmem [#allocation11], %s1267
          %1270 = dma.done %s1265, 4096
        $region80: #{tpu_custom_call.1} parent=75 // pred_fallthru
          _
      $region76: #{tpu_custom_call.1} parent=5 // pred_fallthru
        _
    $region6: #{tpu_custom_call.1} parent=1 // loop_footer
      %s25 = sadd.s32 1, %s21
    $region7: #{tpu_custom_call.1} parent=1 // loop_footer_branch
      %20 = sbr.rel target = $region3
    $region8: #{tpu_custom_call.1} parent=1 // loop_exit
      _
    %1271 = vsyncpa [#allocation3], 1
    %s1272 = scalar_lea.sflag [#allocation3], 1
    %1273 = vsyncpa %s1272, 1
    %1274 = vsyncpa [#allocation6], 1
    %1275 = vsyncpa [#allocation9], 1
    %1276 = vsyncpa [#allocation4], 1
    %s1277 = scalar_lea.sflag [#allocation4], 1
    %1278 = vsyncpa %s1277, 1

</llo_original>
